<compile_context>
chip_gen: v6e
topology: v6e:2x2x1
jax: 0.10.0
libtpu: 0.0.40
codegen_flags: <defaults>
</compile_context>

<pallas_src>
import math
import functools

import jax
import jax.numpy as jnp
from jax.experimental import pallas as pl
from jax.experimental.pallas import tpu as pltpu


_MIB = 1024 * 1024


# ---------------------------------------------------------------------------
# Generation-aware VMEM budgets
# ---------------------------------------------------------------------------
def _vmem_budgets():
    """Conservative defaults fit every TPU generation (incl. v7x's 64 MiB
    VMEM / 32 MiB scoped default); raised when 128 MiB VMEM is detected."""
    fused_budget = 20 * _MIB        # fused-path whole-problem footprint cap
    b_resident_budget = 14 * _MIB   # double-buffered K-resident support panel
    vmem_limit = 30 * _MIB          # scoped-VMEM limit passed to the compiler
    try:
        info = pltpu.get_tpu_info()
        if getattr(info, "vmem_capacity_bytes", 0) >= 100 * _MIB:
            # v5e / v6e: 128 MiB physical VMEM -> allow larger resident panels.
            fused_budget = 24 * _MIB
            b_resident_budget = 24 * _MIB
            vmem_limit = 48 * _MIB
    except Exception:
        pass  # unknown hardware: keep the conservative caps
    return fused_budget, b_resident_budget, vmem_limit


_FUSED_VMEM_BUDGET, _B_RESIDENT_BUDGET, _VMEM_LIMIT_BYTES = _vmem_budgets()


# ---------------------------------------------------------------------------
# Matmul precision: true f32 on the MXU when the lowering supports it
# ---------------------------------------------------------------------------
def _resolve_dot_precision():
    """The PyTorch module is f32; with default precision the MXU truncates f32
    operands to bf16 per pass.  Probe once whether Precision.HIGHEST lowers on
    this jax/libtpu build (true-f32 multi-pass contraction); otherwise fall
    back to DEFAULT so the script always runs."""
    try:
        def probe(a_ref, b_ref, o_ref):
            o_ref[...] = jnp.dot(a_ref[...], b_ref[...],
                                 preferred_element_type=jnp.float32,
                                 precision=jax.lax.Precision.HIGHEST)

        fn = pl.pallas_call(
            probe, out_shape=jax.ShapeDtypeStruct((8, 128), jnp.float32))
        # Ragged (non-128) contraction dim mirrors the riskiest real shape.
        jax.jit(fn).lower(
            jax.ShapeDtypeStruct((8, 96), jnp.float32),
            jax.ShapeDtypeStruct((96, 128), jnp.float32),
        ).compile()
        return jax.lax.Precision.HIGHEST
    except Exception:
        return jax.lax.Precision.DEFAULT


_DOT_PRECISION = _resolve_dot_precision()


# ---------------------------------------------------------------------------
# Helpers
# ---------------------------------------------------------------------------
def _round_up(x, m):
    return ((x + m - 1) // m) * m


def _pick_m_tile(m):
    """Largest 8-aligned row tile that divides the 8-aligned M exactly,
    preferring >=2 tiles (v7x 2-TC balance); padding is a rare fallback."""
    m_pad = _round_up(m, 8)
    if m_pad <= 256:
        return m_pad
    for c in (512, 256, 128, 64):
        if m_pad % c == 0 and m_pad // c >= 2:
            return c
    if m_pad <= 512:
        return m_pad                  # one exact (ragged) tile, no padding
    return 256                        # rare ragged-large case: pad M up


def _pick_lane_tile(n):
    """Column tile: full width when small (no padding), else a 128-multiple
    divisor of the 128-aligned width."""
    n_pad = _round_up(n, 128)
    if n_pad <= 512:
        return n
    for c in (512, 256, 128):
        if n_pad % c == 0:
            return c
    return 128


def _pick_k_tile(k):
    """Returns (tk, padded_k, whole_k)."""
    if k <= 1024:
        return k, k, True             # single K step, no padding at all
    k_p = _round_up(k, 128)
    for c in (512, 256, 128):         # 128 always divides -> always returns
        if k_p % c == 0:
            return c, k_p, False
    return 128, k_p, False


# ---------------------------------------------------------------------------
# Fused single-invocation path (small N: everything resident in VMEM)
# ---------------------------------------------------------------------------
def _fused_gcn_kernel(x_ref, w_ref, adj_ref, out_ref, *, precision):
    support = jnp.dot(x_ref[...], w_ref[...],
                      preferred_element_type=jnp.float32, precision=precision)
    out_ref[...] = jnp.dot(adj_ref[...], support,
                           preferred_element_type=jnp.float32,
                           precision=precision).astype(out_ref.dtype)


def _fused_gcn(x, adj, weight):
    n, f_in = x.shape
    f_out = weight.shape[1]
    flops = 2 * n * f_in * f_out + 2 * n * n * f_out
    bytes_accessed = 4 * (n * f_in + f_in * f_out + n * n + n * f_out)
    return pl.pallas_call(
        functools.partial(_fused_gcn_kernel, precision=_DOT_PRECISION),
        out_shape=jax.ShapeDtypeStruct((n, f_out), x.dtype),
        compiler_params=pltpu.CompilerParams(
            vmem_limit_bytes=_VMEM_LIMIT_BYTES),
        cost_estimate=pl.CostEstimate(
            flops=flops, transcendentals=0, bytes_accessed=bytes_accessed),
    )(x, weight, adj)


# ---------------------------------------------------------------------------
# Tiled matmul path (large N)
# ---------------------------------------------------------------------------
def _matmul_kernel(a_ref, b_ref, o_ref, *, tk, b_k_resident, precision):
    kk = pl.program_id(2)

    if b_k_resident:
        # B block holds the full (padded) K panel; slice this step's K chunk.
        k0 = pl.multiple_of(kk * tk, tk)
        b_tile = b_ref[pl.ds(k0, tk), :]
    else:
        b_tile = b_ref[...]

    step = jnp.dot(a_ref[...], b_tile,
                   preferred_element_type=jnp.float32, precision=precision)

    # Accumulate directly into the (f32, K-revisited) output block: write on
    # the first K step, add on later ones.  No scratch accumulator and no
    # per-K-step copy; single store when the K grid has one step.
    @pl.when(kk == 0)
    def _():
        o_ref[...] = step

    @pl.when(kk > 0)
    def _():
        o_ref[...] += step


def _tiled_matmul(a, b):
    """C = A @ B (f32 result), tiled for the MXU over grid (M/tm, N/tn, K/tk)."""
    m, k = a.shape
    k2, n = b.shape
    assert k == k2

    tm = _pick_m_tile(m)
    tn = _pick_lane_tile(n)
    tk, k_p, whole_k = _pick_k_tile(k)

    m_p = _round_up(m, tm)
    n_p = n if tn == n else _round_up(n, tn)

    # Zero-pad only when a dim cannot be expressed as exact tiles (matmul-safe).
    # With the pickers above this is rare (K > 1024 and not 128-aligned, or a
    # ragged-large M).
    if (m_p, k_p) != (m, k):
        a = jnp.pad(a, ((0, m_p - m), (0, k_p - k)))
    if (k_p, n_p) != (k, n):
        b = jnp.pad(b, ((0, k_p - k), (0, n_p - n)))

    gi, gj, gk = m_p // tm, n_p // tn, k_p // tk

    # Keep the whole K panel of B resident in VMEM when it fits the budget
    # (double-buffered by the pipeline; kk-invariant index -> fetched once).
    b_resident = (not whole_k) and (2 * k_p * tn * 4 <= _B_RESIDENT_BUDGET)
    b_block_k = k_p if b_resident else tk
    if b_resident or whole_k:
        b_index_map = lambda i, j, kk: (0, j)
    else:
        b_index_map = lambda i, j, kk: (kk, j)

    kernel = functools.partial(
        _matmul_kernel, tk=tk, b_k_resident=b_resident,
        precision=_DOT_PRECISION)

    # Bytes actually streamed: A once per j-tile; B once if its block index
    # never changes, else once per i-tile; C written once.
    b_holds_all_k = b_block_k == k_p
    b_reads = 1 if (b_holds_all_k and gj == 1) else gi
    cost = pl.CostEstimate(
        flops=2 * m_p * n_p * k_p,
        transcendentals=0,
        bytes_accessed=4 * (m_p * k_p * gj + k_p * n_p * b_reads + m_p * n_p),
    )

    out = pl.pallas_call(
        kernel,
        out_shape=jax.ShapeDtypeStruct((m_p, n_p), jnp.float32),
        grid_spec=pltpu.PrefetchScalarGridSpec(
            num_scalar_prefetch=0,
            grid=(gi, gj, gk),
            in_specs=[
                pl.BlockSpec((tm, tk), lambda i, j, kk: (i, kk)),
                pl.BlockSpec((b_block_k, tn), b_index_map),
            ],
            out_specs=pl.BlockSpec((tm, tn), lambda i, j, kk: (i, j)),
        ),
        compiler_params=pltpu.CompilerParams(
            dimension_semantics=("parallel", "parallel", "arbitrary"),
            vmem_limit_bytes=_VMEM_LIMIT_BYTES,
        ),
        cost_estimate=cost,
    )(a, b)

    if (m_p, n_p) != (m, n):
        out = out[:m, :n]
    return out


# ---------------------------------------------------------------------------
# Public entry point
# ---------------------------------------------------------------------------
@functools.partial(jax.jit, static_argnames=("force_tiled",))
def graph_convolution_layer(x, adj, weight, force_tiled=False):
    n, f_in = x.shape
    f_out = weight.shape[1]
    assert adj.shape == (n, n)

    # Whole-problem footprint (inputs + support temp + output), f32, 1x each.
    footprint = 4 * (n * f_in + f_in * f_out + n * n + 2 * n * f_out)
    if (not force_tiled) and footprint <= _FUSED_VMEM_BUDGET:
        return _fused_gcn(x, adj, weight)

    support = _tiled_matmul(x, weight)       # [N, F_out], f32
    out = _tiled_matmul(adj, support)        # [N, F_out], f32
    return out.astype(x.dtype)


def init_params(key, in_features, out_features):
    """Deterministic init mirroring reset_parameters(): U(-stdv, stdv)."""
    stdv = 1.0 / math.sqrt(out_features)
    k_w, k_b = jax.random.split(key)
    weight = jax.random.uniform(
        k_w, (in_features, out_features), jnp.float32, minval=-stdv, maxval=stdv)
    bias = jax.random.uniform(
        k_b, (out_features,), jnp.float32, minval=-stdv, maxval=stdv
    )  # unused in forward, kept for parity with the nn.Module
    return weight, bias


if __name__ == "__main__":
    key = jax.random.PRNGKey(0)
    k1, k2, k3, k4, k5, k6, k7, k8, k9 = jax.random.split(key, 9)

    def reference(x, adj, w):
        sup = jnp.matmul(x, w, precision=jax.lax.Precision.HIGHEST)
        return jnp.matmul(adj, sup, precision=jax.lax.Precision.HIGHEST)

    # --- small case: fused single-invocation path ---------------------------
    N1, FIN1, FOUT1 = 128, 64, 128
    x1 = jax.random.normal(k1, (N1, FIN1), dtype=jnp.float32)
    a1 = jax.random.uniform(k2, (N1, N1), dtype=jnp.float32)
    a1 = (a1 + a1.T) * 0.5
    a1 = a1 / jnp.sum(a1, axis=1, keepdims=True)
    w1, b1 = init_params(k3, FIN1, FOUT1)

    out1 = jax.block_until_ready(graph_convolution_layer(x1, a1, w1))
    ref1 = reference(x1, a1, w1)
    assert out1.shape == (N1, FOUT1)
    assert jnp.allclose(out1, ref1, atol=2e-3, rtol=2e-3), float(
        jnp.max(jnp.abs(out1 - ref1)))

    # --- ragged case: tiled path, exact 128-row tiles, whole-K reduction ----
    N2, FIN2, FOUT2 = 384, 96, 256
    x2 = jax.random.normal(k4, (N2, FIN2), dtype=jnp.float32)
    a2 = jax.random.uniform(k5, (N2, N2), dtype=jnp.float32)
    a2 = a2 / jnp.sum(a2, axis=1, keepdims=True)
    w2, b2 = init_params(k6, FIN2, FOUT2)

    out2 = jax.block_until_ready(
        graph_convolution_layer(x2, a2, w2, force_tiled=True))
    ref2 = reference(x2, a2, w2)
    assert out2.shape == (N2, FOUT2)
    assert jnp.allclose(out2, ref2, atol=2e-3, rtol=2e-3), float(
        jnp.max(jnp.abs(out2 - ref2)))

    # --- larger case: tiled path, multi-K-step reduction with the K-resident
    #     support panel (K = 1280 > 1024) -------------------------------------
    N3, FIN3, FOUT3 = 1280, 96, 256
    x3 = jax.random.normal(k7, (N3, FIN3), dtype=jnp.float32)
    a3 = jax.random.uniform(k8, (N3, N3), dtype=jnp.float32)
    a3 = a3 / jnp.sum(a3, axis=1, keepdims=True)
    w3, b3 = init_params(k9, FIN3, FOUT3)

    out3 = jax.block_until_ready(
        graph_convolution_layer(x3, a3, w3, force_tiled=True))
    ref3 = reference(x3, a3, w3)
    assert out3.shape == (N3, FOUT3)
    assert jnp.allclose(out3, ref3, atol=2e-3, rtol=2e-3), float(
        jnp.max(jnp.abs(out3 - ref3)))

    print("KERNEL_OK")
</pallas_src>

<mosaic_0001>
module attributes {stable_mosaic.version = 11 : i64} {
  func.func @_fused_gcn_kernel(%arg0: memref<128x64xf32, #tpu.memory_space<vmem>>, %arg1: memref<64x128xf32, #tpu.memory_space<vmem>>, %arg2: memref<128x128xf32, #tpu.memory_space<vmem>>, %arg3: memref<128x128xf32, #tpu.memory_space<vmem>>) attributes {dimension_semantics = [], scalar_prefetch = 0 : i64, scratch_operands = 0 : i64, tpu.core_type = #tpu.core_type<tc>} {
    %c0 = arith.constant 0 : index
    %c0_0 = arith.constant 0 : index
    %0 = vector.load %arg0[%c0, %c0_0] : memref<128x64xf32, #tpu.memory_space<vmem>>, vector<128x64xf32>
    %c0_1 = arith.constant 0 : index
    %c0_2 = arith.constant 0 : index
    %1 = vector.load %arg1[%c0_1, %c0_2] : memref<64x128xf32, #tpu.memory_space<vmem>>, vector<64x128xf32>
    %cst = arith.constant dense<0.000000e+00> : vector<128x128xf32>
    %2 = tpu.matmul %0, %1, %cst {dimension_numbers = #tpu.dot_dimension_numbers<[1], [0], [0], [1], [0, 0, 1, 1], [], []>} : vector<128x64xf32>, vector<64x128xf32>, vector<128x128xf32> -> vector<128x128xf32>
    %c0_3 = arith.constant 0 : index
    %c0_4 = arith.constant 0 : index
    %3 = vector.load %arg2[%c0_3, %c0_4] : memref<128x128xf32, #tpu.memory_space<vmem>>, vector<128x128xf32>
    %cst_5 = arith.constant dense<0.000000e+00> : vector<128x128xf32>
    %4 = tpu.matmul %3, %2, %cst_5 {dimension_numbers = #tpu.dot_dimension_numbers<[1], [0], [0], [1], [0, 0, 1, 1], [], []>} : vector<128x128xf32>, vector<128x128xf32>, vector<128x128xf32> -> vector<128x128xf32>
    %c0_6 = arith.constant 0 : index
    %c0_7 = arith.constant 0 : index
    %5 = vector.load %arg3[%c0_6, %c0_7] : memref<128x128xf32, #tpu.memory_space<vmem>>, vector<128x128xf32>
    tpu.vector_store %arg3[%c0_6, %c0_7], %4 {strides = array<i32>} : memref<128x128xf32, #tpu.memory_space<vmem>>, vector<128x128xf32>,
    return
  }
}

</mosaic_0001>

<llo_original>
// kernel: graph_convolution_layer.1
$region0: #{graph_convolution_layer.1}
  #allocation0 [shape = 'u32[]', space=smem, size = 0x4, offset = 0x4, fixed_abs, tag = 'smem constant byte address 0x4 - core index']
  #allocation1 [shape = 'u32[144,128]{1,0:T(1,128)}', space=vmem, size = 0x12000, scoped, tag = 'internal scratch']
  %s0 = inlined_call_operand.vmem [shape: f32[128,64], index: 0, kind: input, shape index: {}]
  %s1 = inlined_call_operand.vmem [shape: f32[64,128], index: 1, kind: input, shape index: {}]
  %s2 = inlined_call_operand.vmem [shape: f32[128,128], index: 2, kind: input, shape index: {}]
  %s3 = inlined_call_operand.hbm [shape: f32[128,128], index: 3, kind: output, shape index: {}]
  %s4 = sld [smem:[#allocation0]]
  $region22: #{graph_convolution_layer.1} parent=0
    _
  %s6 = ssub.s32 1, %s4
  %s7 = scalar_select 0, %s6, %s4
  $region1: #{graph_convolution_layer.1} parent=0
    #allocation2 [shape = 'u8[65536]{0}', space=vmem, size = 0x10000, scoped, tag = 'output window, operand 0, single buffered']
    #allocation3 [shape = 's32[1]{0}', space=sflag, size = 0x4, scoped, tag = 'scoped memory for graph_convolution_layer.1']
    %8 = vsyncpa [#allocation3], 0
    // Predicated region
    $region2: #{graph_convolution_layer.1} parent=1 // pred_check
      _
    $region3: #{graph_convolution_layer.1} parent=1 // pred_check_branch
      %10 = sbr.rel (0) target = $region5
    $region4: #{graph_convolution_layer.1} parent=1 // pred_region
      _
    $region5: #{graph_convolution_layer.1} parent=1 // pred_fallthru
      _
    // Predicated region
    $region6: #{graph_convolution_layer.1} parent=1 // pred_check
      _
    $region7: #{graph_convolution_layer.1} parent=1 // pred_check_branch
      %12 = sbr.rel (0) target = $region9
    $region8: #{graph_convolution_layer.1} parent=1 // pred_region
      _
    $region9: #{graph_convolution_layer.1} parent=1 // pred_fallthru
      _
    // Predicated region
    $region10: #{graph_convolution_layer.1} parent=1 // pred_check
      _
    $region11: #{graph_convolution_layer.1} parent=1 // pred_check_branch
      %14 = sbr.rel (0) target = $region13
    $region12: #{graph_convolution_layer.1} parent=1 // pred_region
      _
    $region13: #{graph_convolution_layer.1} parent=1 // pred_fallthru
      _
    %v15 = vld [vmem:[%s0] sm:$0xff]
    %v16 = vld [vmem:[%s0 + $0x8] sm:$0xff]
    %v17 = vld [vmem:[%s0 + $0x10] sm:$0xff]
    %v18 = vld [vmem:[%s0 + $0x18] sm:$0xff]
    %v19 = vld [vmem:[%s0 + $0x20] sm:$0xff]
    %v20 = vld [vmem:[%s0 + $0x28] sm:$0xff]
    %v21 = vld [vmem:[%s0 + $0x30] sm:$0xff]
    %v22 = vld [vmem:[%s0 + $0x38] sm:$0xff]
    %v23 = vld [vmem:[%s0 + $0x40] sm:$0xff]
    %v24 = vld [vmem:[%s0 + $0x48] sm:$0xff]
    %v25 = vld [vmem:[%s0 + $0x50] sm:$0xff]
    %v26 = vld [vmem:[%s0 + $0x58] sm:$0xff]
    %v27 = vld [vmem:[%s0 + $0x60] sm:$0xff]
    %v28 = vld [vmem:[%s0 + $0x68] sm:$0xff]
    %v29 = vld [vmem:[%s0 + $0x70] sm:$0xff]
    %v30 = vld [vmem:[%s0 + $0x78] sm:$0xff]
    %v31 = vld [vmem:[%s1] sm:$0xff]
    %v32 = vld [vmem:[%s1 + $0x8] sm:$0xff]
    %v33 = vld [vmem:[%s1 + $0x10] sm:$0xff]
    %v34 = vld [vmem:[%s1 + $0x18] sm:$0xff]
    %v35 = vld [vmem:[%s1 + $0x20] sm:$0xff]
    %v36 = vld [vmem:[%s1 + $0x28] sm:$0xff]
    %v37 = vld [vmem:[%s1 + $0x30] sm:$0xff]
    %v38 = vld [vmem:[%s1 + $0x38] sm:$0xff]
    %vm39 = vcmask 523264
    %v41 = vsel %vm39, %v15, 0
    %v44 = vsel %vm39, %v16, 0
    %v47 = vsel %vm39, %v17, 0
    %v50 = vsel %vm39, %v18, 0
    %v53 = vsel %vm39, %v19, 0
    %v56 = vsel %vm39, %v20, 0
    %v59 = vsel %vm39, %v21, 0
    %v62 = vsel %vm39, %v22, 0
    %v65 = vsel %vm39, %v23, 0
    %v68 = vsel %vm39, %v24, 0
    %v71 = vsel %vm39, %v25, 0
    %v74 = vsel %vm39, %v26, 0
    %v77 = vsel %vm39, %v27, 0
    %v80 = vsel %vm39, %v28, 0
    %v83 = vsel %vm39, %v29, 0
    %v86 = vsel %vm39, %v30, 0
    %88 = vmatprep.subr.mxu0 0.0
    %89 = vmatpush1.msra.mxu0 0.0
    %90 = vmatprep.subr.mxu0 0.0
    %91 = vmatpush1.msra.mxu0 0.0
    %92 = vmatprep.subr.mxu0 0.0
    %93 = vmatpush1.msra.mxu0 0.0
    %94 = vmatprep.subr.mxu0 0.0
    %95 = vmatpush1.msra.mxu0 0.0
    %96 = vmatprep.subr.mxu0 0.0
    %97 = vmatpush1.msra.mxu0 0.0
    %98 = vmatprep.subr.mxu0 0.0
    %99 = vmatpush1.msra.mxu0 0.0
    %100 = vmatprep.subr.mxu0 0.0
    %101 = vmatpush1.msra.mxu0 0.0
    %102 = vmatprep.subr.mxu0 0.0
    %103 = vmatpush1.msra.mxu0 0.0
    %104 = vmatprep.subr.mxu0 0.0
    %105 = vmatpush1.msra.mxu0 %v38
    %106 = vmatprep.subr.mxu0 0.0
    %107 = vmatpush1.msra.mxu0 %v37
    %108 = vmatprep.subr.mxu0 0.0
    %109 = vmatpush1.msra.mxu0 %v36
    %110 = vmatprep.subr.mxu0 0.0
    %111 = vmatpush1.msra.mxu0 %v35
    %112 = vmatprep.subr.mxu0 0.0
    %113 = vmatpush1.msra.mxu0 %v34
    %114 = vmatprep.subr.mxu0 0.0
    %115 = vmatpush1.msra.mxu0 %v33
    %116 = vmatprep.subr.mxu0 0.0
    %117 = vmatpush1.msra.mxu0 %v32
    %118 = vmatprep.subr.mxu0 0.0
    %119 = vmatpush1.msra.mxu0 %v31
    %120 = vmatprep.subr.mxu0 0.0
    %121 = vmatpush2.msra.mxu0 0.0
    %122 = vmatprep.subr.mxu0 0.0
    %123 = vmatpush2.msra.mxu0 0.0
    %124 = vmatprep.subr.mxu0 0.0
    %125 = vmatpush2.msra.mxu0 0.0
    %126 = vmatprep.subr.mxu0 0.0
    %127 = vmatpush2.msra.mxu0 0.0
    %128 = vmatprep.subr.mxu0 0.0
    %129 = vmatpush2.msra.mxu0 0.0
    %130 = vmatprep.subr.mxu0 0.0
    %131 = vmatpush2.msra.mxu0 0.0
    %132 = vmatprep.subr.mxu0 0.0
    %133 = vmatpush2.msra.mxu0 0.0
    %134 = vmatprep.subr.mxu0 0.0
    %135 = vmatpush2.msra.mxu0 0.0
    %136 = vmatprep.subr.mxu0 0.0
    %137 = vmatpush2.msra.mxu0 0.0
    %138 = vmatprep.subr.mxu0 0.0
    %139 = vmatpush2.msra.mxu0 0.0
    %140 = vmatprep.subr.mxu0 0.0
    %141 = vmatpush2.msra.mxu0 0.0
    %142 = vmatprep.subr.mxu0 0.0
    %143 = vmatpush2.msra.mxu0 0.0
    %144 = vmatprep.subr.mxu0 0.0
    %145 = vmatpush2.msra.mxu0 0.0
    %146 = vmatprep.subr.mxu0 0.0
    %147 = vmatpush2.msra.mxu0 0.0
    %148 = vmatprep.subr.mxu0 0.0
    %149 = vmatpush2.msra.mxu0 0.0
    %150 = vmatprep.subr.mxu0 0.0
    %151 = vmatpush2.msra.mxu0 0.0
    %152 = vmatprep.mubr.f32.mxu0 0.0
    %153 = vmatmul.mubr.f32.gmra.mxu0 %v41
    %v154 = vpop.f32.mrf.mxu0
    %v155 = vadd.f32 0.0, %v154
    %v156 = vpop.f32.mrf.mxu0
    %157 = vmatprep.mubr.f32.mxu0 0.0
    %158 = vmatmul.mubr.f32.gmra.mxu0 %v44
    %v159 = vpop.f32.mrf.mxu0
    %v160 = vadd.f32 0.0, %v159
    %v161 = vpop.f32.mrf.mxu0
    %162 = vmatprep.mubr.f32.mxu0 0.0
    %163 = vmatmul.mubr.f32.gmra.mxu0 %v47
    %v164 = vpop.f32.mrf.mxu0
    %v165 = vadd.f32 0.0, %v164
    %v166 = vpop.f32.mrf.mxu0
    %167 = vmatprep.mubr.f32.mxu0 0.0
    %168 = vmatmul.mubr.f32.gmra.mxu0 %v50
    %v169 = vpop.f32.mrf.mxu0
    %v170 = vadd.f32 0.0, %v169
    %v171 = vpop.f32.mrf.mxu0
    %172 = vmatprep.mubr.f32.mxu0 0.0
    %173 = vmatmul.mubr.f32.gmra.mxu0 %v53
    %v174 = vpop.f32.mrf.mxu0
    %v175 = vadd.f32 0.0, %v174
    %v176 = vpop.f32.mrf.mxu0
    %177 = vmatprep.mubr.f32.mxu0 0.0
    %178 = vmatmul.mubr.f32.gmra.mxu0 %v56
    %v179 = vpop.f32.mrf.mxu0
    %v180 = vadd.f32 0.0, %v179
    %v181 = vpop.f32.mrf.mxu0
    %182 = vmatprep.mubr.f32.mxu0 0.0
    %183 = vmatmul.mubr.f32.gmra.mxu0 %v59
    %v184 = vpop.f32.mrf.mxu0
    %v185 = vadd.f32 0.0, %v184
    %v186 = vpop.f32.mrf.mxu0
    %187 = vmatprep.mubr.f32.mxu0 0.0
    %188 = vmatmul.mubr.f32.gmra.mxu0 %v62
    %v189 = vpop.f32.mrf.mxu0
    %v190 = vadd.f32 0.0, %v189
    %v191 = vpop.f32.mrf.mxu0
    %192 = vmatprep.mubr.f32.mxu0 0.0
    %193 = vmatmul.mubr.f32.gmra.mxu0 %v65
    %v194 = vpop.f32.mrf.mxu0
    %v195 = vadd.f32 0.0, %v194
    %v196 = vpop.f32.mrf.mxu0
    %197 = vmatprep.mubr.f32.mxu0 0.0
    %198 = vmatmul.mubr.f32.gmra.mxu0 %v68
    %v199 = vpop.f32.mrf.mxu0
    %v200 = vadd.f32 0.0, %v199
    %v201 = vpop.f32.mrf.mxu0
    %202 = vmatprep.mubr.f32.mxu0 0.0
    %203 = vmatmul.mubr.f32.gmra.mxu0 %v71
    %v204 = vpop.f32.mrf.mxu0
    %v205 = vadd.f32 0.0, %v204
    %v206 = vpop.f32.mrf.mxu0
    %207 = vmatprep.mubr.f32.mxu0 0.0
    %208 = vmatmul.mubr.f32.gmra.mxu0 %v74
    %v209 = vpop.f32.mrf.mxu0
    %v210 = vadd.f32 0.0, %v209
    %v211 = vpop.f32.mrf.mxu0
    %212 = vmatprep.mubr.f32.mxu0 0.0
    %213 = vmatmul.mubr.f32.gmra.mxu0 %v77
    %v214 = vpop.f32.mrf.mxu0
    %v215 = vadd.f32 0.0, %v214
    %v216 = vpop.f32.mrf.mxu0
    %217 = vmatprep.mubr.f32.mxu0 0.0
    %218 = vmatmul.mubr.f32.gmra.mxu0 %v80
    %v219 = vpop.f32.mrf.mxu0
    %v220 = vadd.f32 0.0, %v219
    %v221 = vpop.f32.mrf.mxu0
    %222 = vmatprep.mubr.f32.mxu0 0.0
    %223 = vmatmul.mubr.f32.gmra.mxu0 %v83
    %v224 = vpop.f32.mrf.mxu0
    %v225 = vadd.f32 0.0, %v224
    %v226 = vpop.f32.mrf.mxu0
    %227 = vmatprep.mubr.f32.mxu0 0.0
    %228 = vmatmul.mubr.f32.gmra.mxu0 %v86
    %v229 = vpop.f32.mrf.mxu0
    %v230 = vadd.f32 0.0, %v229
    %v231 = vpop.f32.mrf.mxu0
    %232 = vdwg.mxu0
    %v233 = vld [vmem:[%s2] sm:$0xff]
    %v234 = vld [vmem:[%s2 + $0x8] sm:$0xff]
    %v235 = vld [vmem:[%s2 + $0x10] sm:$0xff]
    %v236 = vld [vmem:[%s2 + $0x18] sm:$0xff]
    %v237 = vld [vmem:[%s2 + $0x20] sm:$0xff]
    %v238 = vld [vmem:[%s2 + $0x28] sm:$0xff]
    %v239 = vld [vmem:[%s2 + $0x30] sm:$0xff]
    %v240 = vld [vmem:[%s2 + $0x38] sm:$0xff]
    %v241 = vld [vmem:[%s2 + $0x40] sm:$0xff]
    %v242 = vld [vmem:[%s2 + $0x48] sm:$0xff]
    %v243 = vld [vmem:[%s2 + $0x50] sm:$0xff]
    %v244 = vld [vmem:[%s2 + $0x58] sm:$0xff]
    %v245 = vld [vmem:[%s2 + $0x60] sm:$0xff]
    %v246 = vld [vmem:[%s2 + $0x68] sm:$0xff]
    %v247 = vld [vmem:[%s2 + $0x70] sm:$0xff]
    %v248 = vld [vmem:[%s2 + $0x78] sm:$0xff]
    %249 = vmatprep.subr.mxu0 0.0
    %250 = vmatpush1.msra.mxu0 %v230
    %251 = vmatprep.subr.mxu0 0.0
    %252 = vmatpush1.msra.mxu0 %v225
    %253 = vmatprep.subr.mxu0 0.0
    %254 = vmatpush1.msra.mxu0 %v220
    %255 = vmatprep.subr.mxu0 0.0
    %256 = vmatpush1.msra.mxu0 %v215
    %257 = vmatprep.subr.mxu0 0.0
    %258 = vmatpush1.msra.mxu0 %v210
    %259 = vmatprep.subr.mxu0 0.0
    %260 = vmatpush1.msra.mxu0 %v205
    %261 = vmatprep.subr.mxu0 0.0
    %262 = vmatpush1.msra.mxu0 %v200
    %263 = vmatprep.subr.mxu0 0.0
    %264 = vmatpush1.msra.mxu0 %v195
    %265 = vmatprep.subr.mxu0 0.0
    %266 = vmatpush1.msra.mxu0 %v190
    %267 = vmatprep.subr.mxu0 0.0
    %268 = vmatpush1.msra.mxu0 %v185
    %269 = vmatprep.subr.mxu0 0.0
    %270 = vmatpush1.msra.mxu0 %v180
    %271 = vmatprep.subr.mxu0 0.0
    %272 = vmatpush1.msra.mxu0 %v175
    %273 = vmatprep.subr.mxu0 0.0
    %274 = vmatpush1.msra.mxu0 %v170
    %275 = vmatprep.subr.mxu0 0.0
    %276 = vmatpush1.msra.mxu0 %v165
    %277 = vmatprep.subr.mxu0 0.0
    %278 = vmatpush1.msra.mxu0 %v160
    %279 = vmatprep.subr.mxu0 0.0
    %280 = vmatpush1.msra.mxu0 %v155
    %281 = vmatprep.subr.mxu0 0.0
    %282 = vmatpush2.msra.mxu0 0.0
    %283 = vmatprep.subr.mxu0 0.0
    %284 = vmatpush2.msra.mxu0 0.0
    %285 = vmatprep.subr.mxu0 0.0
    %286 = vmatpush2.msra.mxu0 0.0
    %287 = vmatprep.subr.mxu0 0.0
    %288 = vmatpush2.msra.mxu0 0.0
    %289 = vmatprep.subr.mxu0 0.0
    %290 = vmatpush2.msra.mxu0 0.0
    %291 = vmatprep.subr.mxu0 0.0
    %292 = vmatpush2.msra.mxu0 0.0
    %293 = vmatprep.subr.mxu0 0.0
    %294 = vmatpush2.msra.mxu0 0.0
    %295 = vmatprep.subr.mxu0 0.0
    %296 = vmatpush2.msra.mxu0 0.0
    %297 = vmatprep.subr.mxu0 0.0
    %298 = vmatpush2.msra.mxu0 0.0
    %299 = vmatprep.subr.mxu0 0.0
    %300 = vmatpush2.msra.mxu0 0.0
    %301 = vmatprep.subr.mxu0 0.0
    %302 = vmatpush2.msra.mxu0 0.0
    %303 = vmatprep.subr.mxu0 0.0
    %304 = vmatpush2.msra.mxu0 0.0
    %305 = vmatprep.subr.mxu0 0.0
    %306 = vmatpush2.msra.mxu0 0.0
    %307 = vmatprep.subr.mxu0 0.0
    %308 = vmatpush2.msra.mxu0 0.0
    %309 = vmatprep.subr.mxu0 0.0
    %310 = vmatpush2.msra.mxu0 0.0
    %311 = vmatprep.subr.mxu0 0.0
    %312 = vmatpush2.msra.mxu0 0.0
    %313 = vmatprep.mubr.f32.mxu0 0.0
    %314 = vmatmul.mubr.f32.gmra.mxu0 %v233
    %v315 = vpop.f32.mrf.mxu0
    %v316 = vadd.f32 0.0, %v315
    %v317 = vpop.f32.mrf.mxu0
    %318 = vmatprep.mubr.f32.mxu0 0.0
    %319 = vmatmul.mubr.f32.gmra.mxu0 %v234
    %v320 = vpop.f32.mrf.mxu0
    %v321 = vadd.f32 0.0, %v320
    %v322 = vpop.f32.mrf.mxu0
    %323 = vmatprep.mubr.f32.mxu0 0.0
    %324 = vmatmul.mubr.f32.gmra.mxu0 %v235
    %v325 = vpop.f32.mrf.mxu0
    %v326 = vadd.f32 0.0, %v325
    %v327 = vpop.f32.mrf.mxu0
    %328 = vmatprep.mubr.f32.mxu0 0.0
    %329 = vmatmul.mubr.f32.gmra.mxu0 %v236
    %v330 = vpop.f32.mrf.mxu0
    %v331 = vadd.f32 0.0, %v330
    %v332 = vpop.f32.mrf.mxu0
    %333 = vmatprep.mubr.f32.mxu0 0.0
    %334 = vmatmul.mubr.f32.gmra.mxu0 %v237
    %v335 = vpop.f32.mrf.mxu0
    %v336 = vadd.f32 0.0, %v335
    %v337 = vpop.f32.mrf.mxu0
    %338 = vmatprep.mubr.f32.mxu0 0.0
    %339 = vmatmul.mubr.f32.gmra.mxu0 %v238
    %v340 = vpop.f32.mrf.mxu0
    %v341 = vadd.f32 0.0, %v340
    %v342 = vpop.f32.mrf.mxu0
    %343 = vmatprep.mubr.f32.mxu0 0.0
    %344 = vmatmul.mubr.f32.gmra.mxu0 %v239
    %v345 = vpop.f32.mrf.mxu0
    %v346 = vadd.f32 0.0, %v345
    %v347 = vpop.f32.mrf.mxu0
    %348 = vmatprep.mubr.f32.mxu0 0.0
    %349 = vmatmul.mubr.f32.gmra.mxu0 %v240
    %v350 = vpop.f32.mrf.mxu0
    %v351 = vadd.f32 0.0, %v350
    %v352 = vpop.f32.mrf.mxu0
    %353 = vmatprep.mubr.f32.mxu0 0.0
    %354 = vmatmul.mubr.f32.gmra.mxu0 %v241
    %v355 = vpop.f32.mrf.mxu0
    %v356 = vadd.f32 0.0, %v355
    %v357 = vpop.f32.mrf.mxu0
    %358 = vmatprep.mubr.f32.mxu0 0.0
    %359 = vmatmul.mubr.f32.gmra.mxu0 %v242
    %v360 = vpop.f32.mrf.mxu0
    %v361 = vadd.f32 0.0, %v360
    %v362 = vpop.f32.mrf.mxu0
    %363 = vmatprep.mubr.f32.mxu0 0.0
    %364 = vmatmul.mubr.f32.gmra.mxu0 %v243
    %v365 = vpop.f32.mrf.mxu0
    %v366 = vadd.f32 0.0, %v365
    %v367 = vpop.f32.mrf.mxu0
    %368 = vmatprep.mubr.f32.mxu0 0.0
    %369 = vmatmul.mubr.f32.gmra.mxu0 %v244
    %v370 = vpop.f32.mrf.mxu0
    %v371 = vadd.f32 0.0, %v370
    %v372 = vpop.f32.mrf.mxu0
    %373 = vmatprep.mubr.f32.mxu0 0.0
    %374 = vmatmul.mubr.f32.gmra.mxu0 %v245
    %v375 = vpop.f32.mrf.mxu0
    %v376 = vadd.f32 0.0, %v375
    %v377 = vpop.f32.mrf.mxu0
    %378 = vmatprep.mubr.f32.mxu0 0.0
    %379 = vmatmul.mubr.f32.gmra.mxu0 %v246
    %v380 = vpop.f32.mrf.mxu0
    %v381 = vadd.f32 0.0, %v380
    %v382 = vpop.f32.mrf.mxu0
    %383 = vmatprep.mubr.f32.mxu0 0.0
    %384 = vmatmul.mubr.f32.gmra.mxu0 %v247
    %v385 = vpop.f32.mrf.mxu0
    %v386 = vadd.f32 0.0, %v385
    %v387 = vpop.f32.mrf.mxu0
    %388 = vmatprep.mubr.f32.mxu0 0.0
    %389 = vmatmul.mubr.f32.gmra.mxu0 %v248
    %v390 = vpop.f32.mrf.mxu0
    %v391 = vadd.f32 0.0, %v390
    %v392 = vpop.f32.mrf.mxu0
    %393 = vdwg.mxu0
    %394 = vst [vmem:[#allocation2] sm:$0xff] %v316
    %395 = vst [vmem:[#allocation2 + $0x8] sm:$0xff] %v321
    %396 = vst [vmem:[#allocation2 + $0x10] sm:$0xff] %v326
    %397 = vst [vmem:[#allocation2 + $0x18] sm:$0xff] %v331
    %398 = vst [vmem:[#allocation2 + $0x20] sm:$0xff] %v336
    %399 = vst [vmem:[#allocation2 + $0x28] sm:$0xff] %v341
    %400 = vst [vmem:[#allocation2 + $0x30] sm:$0xff] %v346
    %401 = vst [vmem:[#allocation2 + $0x38] sm:$0xff] %v351
    %402 = vst [vmem:[#allocation2 + $0x40] sm:$0xff] %v356
    %403 = vst [vmem:[#allocation2 + $0x48] sm:$0xff] %v361
    %404 = vst [vmem:[#allocation2 + $0x50] sm:$0xff] %v366
    %405 = vst [vmem:[#allocation2 + $0x58] sm:$0xff] %v371
    %406 = vst [vmem:[#allocation2 + $0x60] sm:$0xff] %v376
    %407 = vst [vmem:[#allocation2 + $0x68] sm:$0xff] %v381
    %408 = vst [vmem:[#allocation2 + $0x70] sm:$0xff] %v386
    %409 = vst [vmem:[#allocation2 + $0x78] sm:$0xff] %v391
    // Predicated region
    $region14: #{graph_convolution_layer.1} parent=1 // pred_check
      _
    $region15: #{graph_convolution_layer.1} parent=1 // pred_check_branch
      %411 = sbr.rel (0) target = $region17
    $region16: #{graph_convolution_layer.1} parent=1 // pred_region
      %s413 = ssub.s32 2048, 2048
      %414 = vsyncadd [#allocation3], %s413
      %s415 = sshll.u32 [#allocation2], 4
      %s416 = int_to_ptr.vmem [resolvable:$true] %s415
      %421 = dma.vmem_to_hbm [thread:$0]  %s416, 2048, %s3, [#allocation3], 128, 128, 8
    $region17: #{graph_convolution_layer.1} parent=1 // pred_fallthru
      _
    // Predicated region
    $region18: #{graph_convolution_layer.1} parent=1 // pred_check
      _
    $region19: #{graph_convolution_layer.1} parent=1 // pred_check_branch
      %423 = sbr.rel (0) target = $region21
    $region20: #{graph_convolution_layer.1} parent=1 // pred_region
      %424 = dma.done [#allocation3], 2048
    $region21: #{graph_convolution_layer.1} parent=1 // pred_fallthru
      _
    %425 = vsyncpa [#allocation3], 1

</llo_original>
